<compile_context>
chip_gen: v7x
topology: tpu7x:2x2x1
jax: 0.10.0
libtpu: 0.0.40
codegen_flags: <defaults>
</compile_context>

<pallas_src>
import functools
import math

import jax
import jax.numpy as jnp
from jax.experimental import pallas as pl
from jax.experimental.pallas import tpu as pltpu

_BF16 = jnp.bfloat16
_F32 = jnp.float32


# ----------------------------------------------------------------------------
# numerics helpers
# ----------------------------------------------------------------------------
def _erf(x):
    # Abramowitz & Stegun 7.1.26 polynomial (used only in the pure-JAX reference,
    # standing in for torch's exact-erf GELU).
    p = 0.3275911
    a1, a2, a3, a4, a5 = 0.254829592, -0.284496736, 1.421413741, -1.453152027, 1.061405429
    s = jnp.sign(x)
    ax = jnp.abs(x)
    t = 1.0 / (1.0 + p * ax)
    poly = ((((a5 * t + a4) * t + a3) * t + a2) * t + a1) * t
    return s * (1.0 - poly * jnp.exp(-ax * ax))


def _gelu_erf(x):
    return 0.5 * x * (1.0 + _erf(x * 0.7071067811865476))


def _gelu_tanh(x):
    # TODO(synk): torch.nn.functional.gelu default is exact erf; tanh form differs by <~1e-3
    # but moves the transcendental to the EUP slot (VPU would otherwise bind on the poly).
    c = 0.7978845608028654  # sqrt(2/pi)
    return 0.5 * x * (1.0 + jnp.tanh(c * (x + 0.044715 * x * x * x)))


def _layernorm(x, gamma, beta, eps=1e-6):
    # TODO(synk): eps=1e-6 follows timm/uform ViT; torch nn.LayerNorm default is 1e-5.
    mu = jnp.mean(x, axis=-1, keepdims=True)
    var = jnp.mean((x - mu) ** 2, axis=-1, keepdims=True)
    return (x - mu) * jax.lax.rsqrt(var + eps) * gamma + beta


def _round_up(x, m):
    return ((x + m - 1) // m) * m


def _vmem_capacity_bytes():
    # Detected per-core VMEM (64 MiB on v7x, 128 MiB on v5e/v6e); conservative fallback.
    try:
        info = pltpu.get_tpu_info()
        for name in ("vmem_capacity_bytes", "vmem_size_bytes", "vmem_bytes"):
            v = getattr(info, name, None)
            if v:
                return int(v)
    except Exception:
        pass
    return 64 * 1024 * 1024


# ----------------------------------------------------------------------------
# Pallas kernels
# ----------------------------------------------------------------------------
def patch_embed_kernel(p_ref, w_ref, b_ref, o_ref):
    # (tm, K)bf16 @ (K, D)bf16 -> f32, + (1, D)f32   == Conv2d(3, D, k=s=patch_size)
    o_ref[...] = (
        jnp.dot(p_ref[...], w_ref[...], preferred_element_type=jnp.float32) + b_ref[...]
    )


# packed per-layer vector rows (width = max(3D, DH))
_ROW_LN1G, _ROW_LN1B, _ROW_BQKV, _ROW_BO, _ROW_LS1 = 0, 1, 2, 3, 4
_ROW_LN2G, _ROW_LN2B, _ROW_B1, _ROW_B2, _ROW_LS2 = 5, 6, 7, 8, 9
_VEC_ROWS = 16  # padded to a sublane multiple


def encoder_stack_kernel(x_ref, vec_ref, wqkv_ref, wo_ref, w1_ref, w2_ref,
                         o_ref, x_sc, *, num_heads, s_valid):
    l = pl.program_id(1)
    bt, s_pad, d = x_sc.shape
    dh = w1_ref.shape[-1]
    nh = num_heads
    hd = d // nh

    # Load the batch tile into the resident f32 scratch on the first layer only.
    @pl.when(l == 0)
    def _():
        x_sc[...] = x_ref[...].astype(jnp.float32)

    # One (16, W) f32 tile holds all small per-layer vectors (single DMA per layer).
    vec = vec_ref[0]
    ln1_g, ln1_b = vec[_ROW_LN1G:_ROW_LN1G + 1, :d], vec[_ROW_LN1B:_ROW_LN1B + 1, :d]
    bqkv = vec[_ROW_BQKV:_ROW_BQKV + 1, :3 * d]
    bo, ls1 = vec[_ROW_BO:_ROW_BO + 1, :d], vec[_ROW_LS1:_ROW_LS1 + 1, :d]
    ln2_g, ln2_b = vec[_ROW_LN2G:_ROW_LN2G + 1, :d], vec[_ROW_LN2B:_ROW_LN2B + 1, :d]
    b1 = vec[_ROW_B1:_ROW_B1 + 1, :dh]
    b2, ls2 = vec[_ROW_B2:_ROW_B2 + 1, :d], vec[_ROW_LS2:_ROW_LS2 + 1, :d]

    x = x_sc[...]                                             # (bt, S, D) f32 residual

    # ---------------- attention branch (pre-LN, fused QKV, head-major) ----------------
    h = _layernorm(x, ln1_g, ln1_b)                           # f32 stats
    hb = h.reshape(bt * s_pad, d).astype(_BF16)
    qkv = jnp.dot(hb, wqkv_ref[0], preferred_element_type=jnp.float32) + bqkv

    scale = 1.0 / math.sqrt(hd)
    q = (qkv[:, 0:d] * scale).reshape(bt, s_pad, nh, hd)      # fold scale into q (f32)
    k = qkv[:, d:2 * d].reshape(bt, s_pad, nh, hd)
    v = qkv[:, 2 * d:3 * d].reshape(bt, s_pad, nh, hd)
    # transpose ONCE to head-major so both contractions have a single leading batch dim.
    q = jnp.swapaxes(q, 1, 2).reshape(bt * nh, s_pad, hd).astype(_BF16)
    k = jnp.swapaxes(k, 1, 2).reshape(bt * nh, s_pad, hd).astype(_BF16)
    v = jnp.swapaxes(v, 1, 2).reshape(bt * nh, s_pad, hd).astype(_BF16)

    scores = jax.lax.dot_general(q, k, (((2,), (2,)), ((0,), (0,))),
                                 preferred_element_type=jnp.float32)   # (bt*nh, S, S)
    if s_pad != s_valid:  # static: additive mask on the padded key columns
        key_ids = jax.lax.broadcasted_iota(jnp.int32, (1, s_pad), 1)
        scores = scores + jnp.where(key_ids < s_valid, 0.0, -1e30)
    scores = scores - jnp.max(scores, axis=-1, keepdims=True)
    p = jnp.exp(scores)
    p = p * pl.reciprocal(jnp.sum(p, axis=-1, keepdims=True), approx=True)

    ctx = jax.lax.dot_general(p.astype(_BF16), v, (((2,), (1,)), ((0,), (0,))),
                              preferred_element_type=jnp.float32)      # (bt*nh, S, hd)
    ctx = jnp.swapaxes(ctx.reshape(bt, nh, s_pad, hd), 1, 2).reshape(bt * s_pad, d)

    attn = jnp.dot(ctx.astype(_BF16), wo_ref[0],
                   preferred_element_type=jnp.float32) + bo
    x = x + ls1 * attn.reshape(bt, s_pad, d)                  # LayerScale residual

    # ---------------- MLP branch (pre-LN) ----------------
    h2 = _layernorm(x, ln2_g, ln2_b)
    m = jnp.dot(h2.reshape(bt * s_pad, d).astype(_BF16), w1_ref[0],
                preferred_element_type=jnp.float32) + b1
    m = _gelu_tanh(m)
    m = jnp.dot(m.astype(_BF16), w2_ref[0],
                preferred_element_type=jnp.float32) + b2
    x = x + ls2 * m.reshape(bt, s_pad, d)

    x_sc[...] = x                                             # carry residual to next layer

    @pl.when(l == pl.num_programs(1) - 1)
    def _():
        o_ref[...] = x.astype(o_ref.dtype)


def embed_head_kernel(x_ref, g_ref, b_ref, w_ref, o_ref):
    # single grid step: LayerNorm over (B, D) + one (B,D)@(D,E) matmul (M = B).
    h = _layernorm(x_ref[...], g_ref[...], b_ref[...])
    o_ref[...] = jnp.dot(h.astype(_BF16), w_ref[...], preferred_element_type=jnp.float32)


# ----------------------------------------------------------------------------
# pallas_call wrappers
# ----------------------------------------------------------------------------
def patch_embed(patches, w_bf16, b_f32, *, tm=512):
    n, k = patches.shape
    d = w_bf16.shape[1]
    tm = min(tm, max(8, _round_up(n, 8)))
    n_pad = _round_up(n, tm)
    if n_pad != n:
        patches = jnp.pad(patches, ((0, n_pad - n), (0, 0)))
    out = pl.pallas_call(
        patch_embed_kernel,
        out_shape=jax.ShapeDtypeStruct((n_pad, d), jnp.float32),
        grid=(n_pad // tm,),
        in_specs=[
            pl.BlockSpec((tm, k), lambda i: (i, 0)),
            pl.BlockSpec((k, d), lambda i: (0, 0)),
            pl.BlockSpec((1, d), lambda i: (0, 0)),
        ],
        out_specs=pl.BlockSpec((tm, d), lambda i: (i, 0)),
        compiler_params=pltpu.CompilerParams(dimension_semantics=("parallel",)),
    )(patches.astype(_BF16), w_bf16, b_f32)
    return out[:n]


def encoder_stack(x, prep, *, s_valid, batch_tile=None):
    b, s_pad, d = x.shape
    nh = prep["num_heads"]
    num_layers = prep["wqkv"].shape[0]
    dh = prep["w1"].shape[-1]
    w_vec = prep["vecs"].shape[-1]

    bt = b if batch_tile is None else batch_tile
    assert b % bt == 0, "batch must divide into batch tiles"
    n_btiles = b // bt

    # explicit VMEM budget (double-buffered bf16 weights, activation blocks, resident
    # scratch, attention/MLP intermediates), capped at ~3/4 of the detected capacity.
    est = (
        4 * (d * 3 * d + d * d + d * dh + dh * d)   # bf16 weight blocks x2 buffers
        + 2 * 4 * _VEC_ROWS * w_vec                 # packed per-layer vectors (f32) x2
        + 2 * 2 * 4 * bt * s_pad * d                # x input block + output block (f32) x2
        + 4 * bt * s_pad * d                        # resident residual scratch (f32)
        + 8 * bt * nh * s_pad * s_pad               # scores (f32) + probs
        + 4 * bt * s_pad * 3 * d                    # fused QKV intermediate (f32)
        + 4 * bt * s_pad * dh                       # MLP intermediate (f32)
    )
    cap = (_vmem_capacity_bytes() * 3) // 4         # ~48 MiB on v7x, ~96 MiB on v5e/v6e
    vmem_limit = int(min(max(2 * est, 16 * 1024 * 1024), cap))

    kernel = functools.partial(encoder_stack_kernel, num_heads=nh, s_valid=s_valid)

    # NOTE(v7x): a "parallel" batch-tile axis shards across the two TensorCores, making
    # EACH core stream the full weight stack; with a single batch tile it stays "arbitrary"
    # so the weights are streamed exactly once per forward.
    batch_sem = "parallel" if n_btiles > 1 else "arbitrary"

    # TODO(synk): on 128 MiB chips (v5e/v6e), pipeline_mode=pl.Buffered(3) on the weight
    # BlockSpecs would hide the per-layer weight DMA behind compute; kept at default depth-2.
    # TODO(synk): for D>=1024 (ViT-L) on v7x, tile w1/w2 along the hidden dim with an extra
    # inner grid axis so double-buffered weight blocks stay <= ~8 MB.
    return pl.pallas_call(
        kernel,
        out_shape=jax.ShapeDtypeStruct((b, s_pad, d), jnp.float32),
        grid=(n_btiles, num_layers),
        in_specs=[
            pl.BlockSpec((bt, s_pad, d), lambda bb, ll: (bb, 0, 0)),       # activations
            pl.BlockSpec((1, _VEC_ROWS, w_vec), lambda bb, ll: (ll, 0, 0)),  # packed vecs
            pl.BlockSpec((1, d, 3 * d), lambda bb, ll: (ll, 0, 0)),        # fused QKV weight
            pl.BlockSpec((1, d, d), lambda bb, ll: (ll, 0, 0)),            # Wo
            pl.BlockSpec((1, d, dh), lambda bb, ll: (ll, 0, 0)),           # W1
            pl.BlockSpec((1, dh, d), lambda bb, ll: (ll, 0, 0)),           # W2
        ],
        out_specs=pl.BlockSpec((bt, s_pad, d), lambda bb, ll: (bb, 0, 0)),
        scratch_shapes=[pltpu.VMEM((bt, s_pad, d), jnp.float32)],
        compiler_params=pltpu.CompilerParams(
            dimension_semantics=(batch_sem, "arbitrary"),
            vmem_limit_bytes=vmem_limit,
        ),
    )(x, prep["vecs"], prep["wqkv"], prep["wo"], prep["w1"], prep["w2"])


def embed_head(cls_tok, gamma, beta, w_proj_bf16):
    b, d = cls_tok.shape
    e = w_proj_bf16.shape[1]
    return pl.pallas_call(
        embed_head_kernel,
        out_shape=jax.ShapeDtypeStruct((b, e), jnp.float32),
        grid=(1,),
        in_specs=[
            pl.BlockSpec((b, d), lambda i: (0, 0)),
            pl.BlockSpec((1, d), lambda i: (0, 0)),
            pl.BlockSpec((1, d), lambda i: (0, 0)),
            pl.BlockSpec((d, e), lambda i: (0, 0)),
        ],
        out_specs=pl.BlockSpec((b, e), lambda i: (0, 0)),
    )(cls_tok, gamma, beta, w_proj_bf16)


# ----------------------------------------------------------------------------
# one-time parameter preparation (fuse QKV, pack small vectors, cast to bf16)
# ----------------------------------------------------------------------------
def prepare_encoder_params(params):
    st = params["stack"]
    d = params["dim"]
    L = st["wq"].shape[0]
    dh = st["w1"].shape[-1]
    w_vec = max(dh, 3 * d)

    wqkv = jnp.concatenate([st["wq"], st["wk"], st["wv"]], axis=-1).astype(_BF16)  # (L,D,3D)
    bqkv = jnp.concatenate([st["bq"], st["bk"], st["bv"]], axis=-1).reshape(L, 3 * d)

    vecs = jnp.zeros((L, _VEC_ROWS, w_vec), jnp.float32)
    vecs = vecs.at[:, _ROW_LN1G, :d].set(st["ln1_g"].reshape(L, d))
    vecs = vecs.at[:, _ROW_LN1B, :d].set(st["ln1_b"].reshape(L, d))
    vecs = vecs.at[:, _ROW_BQKV, :3 * d].set(bqkv)
    vecs = vecs.at[:, _ROW_BO, :d].set(st["bo"].reshape(L, d))
    vecs = vecs.at[:, _ROW_LS1, :d].set(st["ls1"].reshape(L, d))
    vecs = vecs.at[:, _ROW_LN2G, :d].set(st["ln2_g"].reshape(L, d))
    vecs = vecs.at[:, _ROW_LN2B, :d].set(st["ln2_b"].reshape(L, d))
    vecs = vecs.at[:, _ROW_B1, :dh].set(st["b1"].reshape(L, dh))
    vecs = vecs.at[:, _ROW_B2, :d].set(st["b2"].reshape(L, d))
    vecs = vecs.at[:, _ROW_LS2, :d].set(st["ls2"].reshape(L, d))

    ps = params["patch_size"]
    patch_w = params["patch_w"].reshape(d, -1).T.astype(_BF16)                      # (K, D)

    return dict(
        dim=d, patch_size=ps, num_heads=params["num_heads"], num_layers=L,
        patch_w=patch_w,
        patch_b=params["patch_b"].reshape(1, d).astype(_F32),
        pos_embed=params["pos_embed"].astype(_F32),
        cls_token=params["cls_token"].astype(_F32),
        vecs=vecs,
        wqkv=wqkv,
        wo=st["wo"].astype(_BF16),
        w1=st["w1"].astype(_BF16),
        w2=st["w2"].astype(_BF16),
        norm_g=params["norm_g"].astype(_F32),
        norm_b=params["norm_b"].astype(_F32),
        proj_w=params["proj_w"].astype(_BF16),
    )


# ----------------------------------------------------------------------------
# full forward (glue in JAX, hot path in Pallas)
# ----------------------------------------------------------------------------
def image_encoder_forward(image, prep):
    b, c, h, w = image.shape
    ps, d = prep["patch_size"], prep["dim"]
    hp, wp = h // ps, w // ps
    n_patches = hp * wp
    s_valid = n_patches + 1
    # TODO(synk): production ViT should pad S to a multiple of 128 for lane-dense scores;
    # sublane (8) padding is enough to exercise the masked-softmax path at toy shapes.
    s_pad = _round_up(s_valid, 8)

    # Conv2d(kernel=stride=ps) == patch extraction + matmul.
    patches = image.reshape(b, c, hp, ps, wp, ps).transpose(0, 2, 4, 1, 3, 5)
    patches = patches.reshape(b * n_patches, c * ps * ps)
    tok = patch_embed(patches, prep["patch_w"], prep["patch_b"]).reshape(b, n_patches, d)

    tok = tok + prep["pos_embed"]
    cls = jnp.broadcast_to(prep["cls_token"], (b, 1, d))
    x = jnp.concatenate([cls, tok], axis=1)                        # (B, S, D)
    if s_pad > s_valid:
        x = jnp.pad(x, ((0, 0), (0, s_pad - s_valid), (0, 0)))
    # TODO(synk): the pos-add / cls-concat / pad could be folded into the stack kernel's
    # l==0 step to save one (B,S,D) HBM round trip; kept in XLA here for simplicity.

    x = encoder_stack(x, prep, s_valid=s_valid)                    # all L layers fused

    features = x[:, :s_valid, :]                                   # (B, S, D)
    embeddings = embed_head(x[:, 0, :], prep["norm_g"], prep["norm_b"], prep["proj_w"])
    return features, embeddings


# ----------------------------------------------------------------------------
# deterministic synthetic parameters (shapes follow uform.VisualEncoder)
# ----------------------------------------------------------------------------
def init_params(key, *, dim=32, patch_size=8, image_size=16,
                num_layers=2, num_heads=2, embedding_dim=64):
    n_patches = (image_size // patch_size) ** 2
    keys = iter(jax.random.split(key, 128))
    L, d = num_layers, dim

    def nrm(shape, scale=0.02):
        return jax.random.normal(next(keys), shape, jnp.float32) * scale

    stack = dict(
        ln1_g=jnp.ones((L, 1, d), jnp.float32), ln1_b=jnp.zeros((L, 1, d), jnp.float32),
        wq=nrm((L, d, d), 0.05), bq=nrm((L, 1, d)),
        wk=nrm((L, d, d), 0.05), bk=nrm((L, 1, d)),
        wv=nrm((L, d, d), 0.05), bv=nrm((L, 1, d)),
        wo=nrm((L, d, d), 0.05), bo=nrm((L, 1, d)),
        ls1=jnp.full((L, 1, d), 0.1, jnp.float32),
        ln2_g=jnp.ones((L, 1, d), jnp.float32), ln2_b=jnp.zeros((L, 1, d), jnp.float32),
        w1=nrm((L, d, 4 * d), 0.05), b1=nrm((L, 1, 4 * d)),
        w2=nrm((L, 4 * d, d), 0.05), b2=nrm((L, 1, d)),
        ls2=jnp.full((L, 1, d), 0.1, jnp.float32),
    )
    return dict(
        dim=dim, patch_size=patch_size, num_heads=num_heads, num_layers=num_layers,
        patch_w=nrm((dim, 3, patch_size, patch_size), 0.05),
        patch_b=nrm((dim,), 0.02),
        pos_embed=nrm((1, n_patches, dim), 0.02),
        cls_token=nrm((1, 1, dim), 0.02),
        norm_g=jnp.ones((1, dim), jnp.float32),
        norm_b=jnp.zeros((1, dim), jnp.float32),
        proj_w=nrm((dim, embedding_dim), 0.05),
        stack=stack,
    )


# ----------------------------------------------------------------------------
# pure-JAX reference (same math, f32, exact-erf GELU, exact softmax) for sanity
# ----------------------------------------------------------------------------
def ref_forward(image, params):
    b, c, h, w = image.shape
    ps, d, nh = params["patch_size"], params["dim"], params["num_heads"]
    hd = d // nh
    hp, wp = h // ps, w // ps
    patches = image.reshape(b, c, hp, ps, wp, ps).transpose(0, 2, 4, 1, 3, 5)
    patches = patches.reshape(b, hp * wp, c * ps * ps)
    tok = patches @ params["patch_w"].reshape(d, -1).T + params["patch_b"].reshape(1, 1, d)
    tok = tok + params["pos_embed"]
    x = jnp.concatenate([jnp.broadcast_to(params["cls_token"], (b, 1, d)), tok], axis=1)

    def ln(y, g, bt):
        mu = y.mean(-1, keepdims=True)
        var = ((y - mu) ** 2).mean(-1, keepdims=True)
        return (y - mu) / jnp.sqrt(var + 1e-6) * g + bt

    st = params["stack"]
    for l in range(params["num_layers"]):
        hs = ln(x, st["ln1_g"][l], st["ln1_b"][l])
        q = (hs @ st["wq"][l] + st["bq"][l]).reshape(b, -1, nh, hd).transpose(0, 2, 1, 3)
        k = (hs @ st["wk"][l] + st["bk"][l]).reshape(b, -1, nh, hd).transpose(0, 2, 1, 3)
        v = (hs @ st["wv"][l] + st["bv"][l]).reshape(b, -1, nh, hd).transpose(0, 2, 1, 3)
        s = (q @ k.transpose(0, 1, 3, 2)) / math.sqrt(hd)
        p = jax.nn.softmax(s, axis=-1)
        ctx = (p @ v).transpose(0, 2, 1, 3).reshape(b, -1, d)
        x = x + st["ls1"][l] * (ctx @ st["wo"][l] + st["bo"][l])
        h2 = ln(x, st["ln2_g"][l], st["ln2_b"][l])
        m = _gelu_erf(h2 @ st["w1"][l] + st["b1"][l])
        x = x + st["ls2"][l] * (m @ st["w2"][l] + st["b2"][l])
    feat = x
    emb = ln(x, params["norm_g"], params["norm_b"])[:, 0, :] @ params["proj_w"]
    return feat, emb


if __name__ == "__main__":
    key = jax.random.PRNGKey(0)
    pkey, xkey = jax.random.split(key)
    params = init_params(pkey)                       # dim=32, heads=2, layers=2, emb=64
    prep = prepare_encoder_params(params)            # one-time fuse / pack / bf16 cast
    image = jax.random.normal(xkey, (2, 3, 16, 16), jnp.float32)   # NCHW like PyTorch

    features, embeddings = image_encoder_forward(image, prep)
    features, embeddings = jax.block_until_ready((features, embeddings))

    ref_f, ref_e = ref_forward(image, params)
    assert features.shape == (2, 5, 32), features.shape
    assert embeddings.shape == (2, 64), embeddings.shape
    assert bool(jnp.all(jnp.isfinite(features))) and bool(jnp.all(jnp.isfinite(embeddings)))
    assert bool(jnp.allclose(features, ref_f, atol=5e-2, rtol=5e-2))
    assert bool(jnp.allclose(embeddings, ref_e, atol=5e-2, rtol=5e-2))
    print("KERNEL_OK")
</pallas_src>

<mosaic_0001>
module attributes {stable_mosaic.version = 11 : i64} {
  func.func @patch_embed_kernel(%arg0: i32, %arg1: memref<8x192xbf16, #tpu.memory_space<vmem>>, %arg2: memref<192x32xbf16, #tpu.memory_space<vmem>>, %arg3: memref<1x32xf32, #tpu.memory_space<vmem>>, %arg4: memref<8x32xf32, #tpu.memory_space<vmem>>) attributes {dimension_semantics = [#tpu.dimension_semantics<parallel>], iteration_bounds = array<i64: 1>, scalar_prefetch = 0 : i64, scratch_operands = 0 : i64, tpu.core_type = #tpu.core_type<tc>, window_params = [{transform_indices = @transform_0, window_bounds = array<i64: 8, 192>}, {pipeline_mode = #tpu.pipeline_mode<synchronous>, transform_indices = @transform_1, window_bounds = array<i64: 192, 32>}, {pipeline_mode = #tpu.pipeline_mode<synchronous>, transform_indices = @transform_2, window_bounds = array<i64: 1, 32>}, {transform_indices = @transform_3, window_bounds = array<i64: 8, 32>}]} {
    %c0 = arith.constant 0 : index
    %c0_0 = arith.constant 0 : index
    %0 = vector.load %arg1[%c0, %c0_0] : memref<8x192xbf16, #tpu.memory_space<vmem>>, vector<8x192xbf16>
    %c0_1 = arith.constant 0 : index
    %c0_2 = arith.constant 0 : index
    %1 = vector.load %arg2[%c0_1, %c0_2] : memref<192x32xbf16, #tpu.memory_space<vmem>>, vector<192x32xbf16>
    %cst = arith.constant dense<0.000000e+00> : vector<8x32xf32>
    %2 = tpu.matmul %0, %1, %cst {dimension_numbers = #tpu.dot_dimension_numbers<[1], [0], [0], [1], [0, 0, 1, 1], [], []>} : vector<8x192xbf16>, vector<192x32xbf16>, vector<8x32xf32> -> vector<8x32xf32>
    %c0_3 = arith.constant 0 : index
    %c0_4 = arith.constant 0 : index
    %3 = vector.load %arg3[%c0_3, %c0_4] : memref<1x32xf32, #tpu.memory_space<vmem>>, vector<1x32xf32>
    %4 = vector.broadcast %3 : vector<1x32xf32> to vector<8x32xf32>
    %5 = arith.addf %2, %4 : vector<8x32xf32>
    %c0_5 = arith.constant 0 : index
    %c0_6 = arith.constant 0 : index
    %6 = vector.load %arg4[%c0_5, %c0_6] : memref<8x32xf32, #tpu.memory_space<vmem>>, vector<8x32xf32>
    tpu.vector_store %arg4[%c0_5, %c0_6], %5 {strides = array<i32>} : memref<8x32xf32, #tpu.memory_space<vmem>>, vector<8x32xf32>,
    return
  }
  func.func @transform_0(%arg0: i32) -> (i32, i32) {
    %c0_i32 = arith.constant 0 : i32
    %c0_i32_0 = arith.constant 0 : i32
    return %arg0, %c0_i32 : i32, i32
  }
  func.func @transform_1(%arg0: i32) -> (i32, i32) {
    %c0_i32 = arith.constant 0 : i32
    %c0_i32_0 = arith.constant 0 : i32
    %c0_i32_1 = arith.constant 0 : i32
    return %c0_i32, %c0_i32_0 : i32, i32
  }
  func.func @transform_2(%arg0: i32) -> (i32, i32) {
    %c0_i32 = arith.constant 0 : i32
    %c0_i32_0 = arith.constant 0 : i32
    %c0_i32_1 = arith.constant 0 : i32
    return %c0_i32, %c0_i32_0 : i32, i32
  }
  func.func @transform_3(%arg0: i32) -> (i32, i32) {
    %c0_i32 = arith.constant 0 : i32
    %c0_i32_0 = arith.constant 0 : i32
    return %arg0, %c0_i32 : i32, i32
  }
}

</mosaic_0001>

<llo_original>
// kernel: tpu_custom_call.1
$region0: #{tpu_custom_call.1}
  #allocation0 [shape = 'u32[]', space=smem, size = 0x4, offset = 0x4, fixed_abs, tag = 'smem constant byte address 0x4 - core index']
  #allocation1 [shape = 'u32[144,128]{1,0:T(1,128)}', space=vmem, size = 0x12000, scoped, tag = 'internal scratch']
  %s0 = inlined_call_operand.vmem [shape: bf16[8,192], index: 0, kind: input, shape index: {}]
  %s1 = inlined_call_operand.vmem [shape: bf16[192,32], index: 1, kind: input, shape index: {}]
  %s2 = inlined_call_operand.vmem [shape: f32[1,32], index: 2, kind: input, shape index: {}]
  %s3 = inlined_call_operand.hbm [shape: f32[8,32], index: 3, kind: output, shape index: {}]
  %s4 = sld [smem:[#allocation0]]
  $region22: #{tpu_custom_call.1} parent=0
    _
  %s6 = ssub.s32 1, %s4
  %s7 = scalar_select 0, %s6, %s4
  $region1: #{tpu_custom_call.1} parent=0
    #allocation2 [shape = 'u8[4096]{0}', space=vmem, size = 0x1000, scoped, tag = 'output window, operand 0, single buffered']
    #allocation3 [shape = 's32[1]{0}', space=sflag, size = 0x4, scoped, tag = 'scoped memory for tpu_custom_call.1']
    %8 = vsyncpa [#allocation3], 0
    // Predicated region
    $region2: #{tpu_custom_call.1} parent=1 // pred_check
      _
    $region3: #{tpu_custom_call.1} parent=1 // pred_check_branch
      %10 = sbr.rel (0) target = $region5
    $region4: #{tpu_custom_call.1} parent=1 // pred_region
      _
    $region5: #{tpu_custom_call.1} parent=1 // pred_fallthru
      _
    // Predicated region
    $region6: #{tpu_custom_call.1} parent=1 // pred_check
      _
    $region7: #{tpu_custom_call.1} parent=1 // pred_check_branch
      %12 = sbr.rel (0) target = $region9
    $region8: #{tpu_custom_call.1} parent=1 // pred_region
      _
    $region9: #{tpu_custom_call.1} parent=1 // pred_fallthru
      _
    // Predicated region
    $region10: #{tpu_custom_call.1} parent=1 // pred_check
      _
    $region11: #{tpu_custom_call.1} parent=1 // pred_check_branch
      %14 = sbr.rel (0) target = $region13
    $region12: #{tpu_custom_call.1} parent=1 // pred_region
      _
    $region13: #{tpu_custom_call.1} parent=1 // pred_fallthru
      _
    %v16 = vld [vmem:[%s0] sm:$0xff]
    %v17 = vld [vmem:[%s1] sm:$0xf]
    %v18 = vld [vmem:[%s1 + $0x4] sm:$0xf]
    %v19 = vld [vmem:[%s1 + $0x8] sm:$0xf]
    %v20 = vld [vmem:[%s1 + $0xc] sm:$0xf]
    %v21 = vld [vmem:[%s1 + $0x10] sm:$0xf]
    %v22 = vld [vmem:[%s1 + $0x14] sm:$0xf]
    %v23 = vld [vmem:[%s1 + $0x18] sm:$0xf]
    %v24 = vld [vmem:[%s1 + $0x1c] sm:$0xf]
    %v25 = vld [vmem:[%s1 + $0x20] sm:$0xf]
    %v26 = vld [vmem:[%s1 + $0x24] sm:$0xf]
    %v27 = vld [vmem:[%s1 + $0x28] sm:$0xf]
    %v28 = vld [vmem:[%s1 + $0x2c] sm:$0xf]
    %v29 = vld [vmem:[%s1 + $0x30] sm:$0xf]
    %v30 = vld [vmem:[%s1 + $0x34] sm:$0xf]
    %v31 = vld [vmem:[%s1 + $0x38] sm:$0xf]
    %v32 = vld [vmem:[%s1 + $0x3c] sm:$0xf]
    %v33 = vld [vmem:[%s1 + $0x40] sm:$0xf]
    %v34 = vld [vmem:[%s1 + $0x44] sm:$0xf]
    %v35 = vld [vmem:[%s1 + $0x48] sm:$0xf]
    %v36 = vld [vmem:[%s1 + $0x4c] sm:$0xf]
    %v37 = vld [vmem:[%s1 + $0x50] sm:$0xf]
    %v38 = vld [vmem:[%s1 + $0x54] sm:$0xf]
    %v39 = vld [vmem:[%s1 + $0x58] sm:$0xf]
    %v40 = vld [vmem:[%s1 + $0x5c] sm:$0xf]
    %v41 = vld [vmem:[%s2] sm:$0x1]
    %v43 = vlaneseq
    %v44 = vshrl.u32 %v43, 7
    %v45 = vsub.s32 0, %v44
    %v46 = vrot.slane %v41, %v45
    %v49 = vunpack.c.l.b16 %v16
    %v50 = vunpack.c.h.b16 %v16
    %v51 = vpack.c.b16 %v49, %v49
    %v52 = vpack.c.b16 %v50, %v50
    %v78 = vunpack.c.l.b16 %v17
    %v79 = vunpack.c.l.b16 %v18
    %v80 = vunpack.c.l.b16 %v19
    %v81 = vunpack.c.l.b16 %v20
    %v82 = vunpack.c.l.b16 %v21
    %v83 = vunpack.c.l.b16 %v22
    %v84 = vunpack.c.l.b16 %v23
    %v85 = vunpack.c.l.b16 %v24
    %v86 = vunpack.c.l.b16 %v25
    %v87 = vunpack.c.l.b16 %v26
    %v88 = vunpack.c.l.b16 %v27
    %v89 = vunpack.c.l.b16 %v28
    %v90 = vunpack.c.l.b16 %v29
    %v91 = vunpack.c.l.b16 %v30
    %v92 = vunpack.c.l.b16 %v31
    %v93 = vunpack.c.l.b16 %v32
    %v94 = vunpack.c.l.b16 %v33
    %v95 = vunpack.c.l.b16 %v34
    %v96 = vunpack.c.l.b16 %v35
    %v97 = vunpack.c.l.b16 %v36
    %v98 = vunpack.c.l.b16 %v37
    %v99 = vunpack.c.l.b16 %v38
    %v100 = vunpack.c.l.b16 %v39
    %v101 = vunpack.c.l.b16 %v40
    %v102 = vpack.c.b16 %v79, %v78
    %v103 = vpack.c.b16 %v81, %v80
    %v104 = vpack.c.b16 %v83, %v82
    %v105 = vpack.c.b16 %v85, %v84
    %v106 = vpack.c.b16 %v87, %v86
    %v107 = vpack.c.b16 %v89, %v88
    %v108 = vpack.c.b16 %v91, %v90
    %v109 = vpack.c.b16 %v93, %v92
    %v110 = vpack.c.b16 %v95, %v94
    %v111 = vpack.c.b16 %v97, %v96
    %v112 = vpack.c.b16 %v99, %v98
    %v113 = vpack.c.b16 %v101, %v100
    %vm126 = vcmask 523264
    %v128 = vsel %vm126, %v52, 0
    %130 = vmatprep.subr.bf16.mxu0 0
    %131 = vmatpush1.bf16.msra.mxu0 %v102
    %132 = vmatprep.subr.bf16.mxu0 0
    %133 = vmatpush1.bf16.msra.mxu0 %v103
    %134 = vmatprep.subr.bf16.mxu0 0
    %135 = vmatpush1.bf16.msra.mxu0 %v104
    %136 = vmatprep.subr.bf16.mxu0 0
    %137 = vmatpush1.bf16.msra.mxu0 %v105
    %138 = vmatprep.subr.bf16.mxu0 0
    %139 = vmatpush1.bf16.msra.mxu0 %v106
    %140 = vmatprep.subr.bf16.mxu0 0
    %141 = vmatpush1.bf16.msra.mxu0 %v107
    %142 = vmatprep.subr.bf16.mxu0 0
    %143 = vmatpush1.bf16.msra.mxu0 %v108
    %144 = vmatprep.subr.bf16.mxu0 0
    %145 = vmatpush1.bf16.msra.mxu0 %v109
    %146 = vmatprep.subr.bf16.mxu0 0
    %147 = vmatpush1.bf16.msra.mxu0 %v110
    %148 = vmatprep.subr.bf16.mxu0 0
    %149 = vmatpush1.bf16.msra.mxu0 %v111
    %150 = vmatprep.subr.bf16.mxu0 0
    %151 = vmatpush1.bf16.msra.mxu0 %v112
    %152 = vmatprep.subr.bf16.mxu0 0
    %153 = vmatpush1.bf16.msra.mxu0 %v113
    %154 = vmatprep.subr.bf16.mxu0 0
    %155 = vmatpush1.bf16.msra.mxu0 0
    %156 = vmatprep.subr.bf16.mxu0 0
    %157 = vmatpush1.bf16.msra.mxu0 0
    %158 = vmatprep.subr.bf16.mxu0 0
    %159 = vmatpush1.bf16.msra.mxu0 0
    %160 = vmatprep.subr.bf16.mxu0 0
    %161 = vmatpush1.bf16.msra.mxu0 0
    %162 = vmatprep.mubr.bf16.mxu0 %v128
    %163 = vmatmul.mubr.bf16.gmra.mrb[0].mxu0 %v51
    %v164 = vpop.f32.mrb[0].mxu0
    %v165 = vadd.f32 %v46, %v164
    %v166 = vpop.f32.mrb[0].mxu0
    %v167 = vpop.f32.mrb[0].mxu0
    %v168 = vpop.f32.mrb[0].mxu0
    %169 = vdwg.mxu0
    %vm170 = vcmask 261120
    %171 = vst.msk [vmem:[#allocation2] sm:$0xff] %vm170, %v165
    // Predicated region
    $region14: #{tpu_custom_call.1} parent=1 // pred_check
      _
    $region15: #{tpu_custom_call.1} parent=1 // pred_check_branch
      %173 = sbr.rel (0) target = $region17
    $region16: #{tpu_custom_call.1} parent=1 // pred_region
      %s175 = ssub.s32 128, 128
      %176 = vsyncadd [#allocation3], %s175
      %s178 = sshll.u32 [#allocation2], 4
      %s179 = int_to_ptr.vmem [resolvable:$true] %s178
      %181 = dma.vmem_to_hbm [thread:$0]  %s179, 128, %s3, [#allocation3]
    $region17: #{tpu_custom_call.1} parent=1 // pred_fallthru
      _
    // Predicated region
    $region18: #{tpu_custom_call.1} parent=1 // pred_check
      _
    $region19: #{tpu_custom_call.1} parent=1 // pred_check_branch
      %183 = sbr.rel (0) target = $region21
    $region20: #{tpu_custom_call.1} parent=1 // pred_region
      %184 = dma.done [#allocation3], 128
    $region21: #{tpu_custom_call.1} parent=1 // pred_fallthru
      _
    %185 = vsyncpa [#allocation3], 1

</llo_original>
